<compile_context>
chip_gen: v6e
topology: v6e:2x2x1
jax: 0.10.0
libtpu: 0.0.40
codegen_flags: <defaults>
</compile_context>

<pallas_src>
import jax
import jax.numpy as jnp
from jax.experimental import pallas as pl
from jax.experimental.pallas import tpu as pltpu


def _round_up(x, m):
    return ((x + m - 1) // m) * m


def focal_loss_kernel(n_ref, logits_ref, targets_ref, alpha_t_ref, gamma_t_ref,
                      out_ref, acc_ref):
    i = pl.program_id(0)

    @pl.when(i == 0)
    def _():
        acc_ref[...] = jnp.zeros_like(acc_ref)

    x = logits_ref[...].astype(jnp.float32)          # (C, TILE_N)
    t = targets_ref[...]                             # (1, TILE_N) int32
    alpha_t = alpha_t_ref[...]                       # (1, TILE_N) f32
    gamma_t = gamma_t_ref[...]                       # (1, TILE_N) f32

    c, tn = x.shape

    # log-softmax over the class (sublane) axis.
    m = jnp.max(x, axis=0, keepdims=True)            # (1, TILE_N)
    z = x - m
    e = jnp.exp(z)                                   # single full-tile EUP exp
    lse = jnp.log(jnp.sum(e, axis=0, keepdims=True))  # (1, TILE_N)

    # Gather the shifted logit at the target class via a sublane one-hot.
    row = jax.lax.broadcasted_iota(jnp.int32, (c, tn), 0)
    onehot = (row == t).astype(jnp.float32)           # (C, TILE_N)
    z_gt = jnp.sum(z * onehot, axis=0, keepdims=True)  # (1, TILE_N)
    log_prob_gt = z_gt - lse
    prob_gt = jnp.exp(log_prob_gt)                     # (1, TILE_N)

    # Focal weight; clamp the base so gamma * log(base) never sees log(0)
    # (avoids NaN when prob_gt rounds to exactly 1).
    base = jnp.maximum(1.0 - prob_gt, 1e-12)
    focal_w = jnp.exp(gamma_t * jnp.log(base))         # == base ** gamma_t
    loss = -alpha_t * focal_w * jnp.log(prob_gt + 1e-8)

    # Mask out padded batch columns and accumulate the partial sum.
    col = jax.lax.broadcasted_iota(jnp.int32, (1, tn), 1)
    valid = ((i * tn + col) < n_ref[0]).astype(jnp.float32)
    acc_ref[...] += jnp.sum(loss * valid, axis=1, keepdims=True)

    @pl.when(i == pl.num_programs(0) - 1)
    def _():
        out_ref[...] = acc_ref[...] / n_ref[0].astype(jnp.float32)


def focal_loss_with_dynamic_gamma(logits, targets, alpha, gamma, *, tile_n=None):
    """logits: [N, C] (any float dtype), targets: [N] int, alpha/gamma: [C]."""
    n, c = logits.shape
    targets = targets.astype(jnp.int32)

    # Per-sample alpha/gamma gathered in the wrapper (tiny C-length lookups).
    alpha_t = alpha.astype(jnp.float32)[targets]      # (N,)
    gamma_t = gamma.astype(jnp.float32)[targets]      # (N,)

    if tile_n is None:
        tile_n = min(1024, _round_up(n, 128))
    tile_n = _round_up(tile_n, 128)
    n_pad = _round_up(n, tile_n)

    # Class on sublanes, batch on lanes; pad batch to a multiple of tile_n.
    logits_t = jnp.pad(jnp.transpose(logits), ((0, 0), (0, n_pad - n)))
    targets_p = jnp.pad(targets, (0, n_pad - n)).reshape(1, n_pad)
    alpha_p = jnp.pad(alpha_t, (0, n_pad - n)).reshape(1, n_pad)
    gamma_p = jnp.pad(gamma_t, (0, n_pad - n)).reshape(1, n_pad)
    n_valid = jnp.array([n], dtype=jnp.int32)

    out = pl.pallas_call(
        focal_loss_kernel,
        out_shape=jax.ShapeDtypeStruct((1, 1), jnp.float32),
        grid_spec=pltpu.PrefetchScalarGridSpec(
            num_scalar_prefetch=1,
            grid=(n_pad // tile_n,),
            in_specs=[
                pl.BlockSpec((c, tile_n), lambda i, n_ref: (0, i)),
                pl.BlockSpec((1, tile_n), lambda i, n_ref: (0, i)),
                pl.BlockSpec((1, tile_n), lambda i, n_ref: (0, i)),
                pl.BlockSpec((1, tile_n), lambda i, n_ref: (0, i)),
            ],
            out_specs=pl.BlockSpec((1, 1), lambda i, n_ref: (0, 0)),
            scratch_shapes=[pltpu.VMEM((1, 1), jnp.float32)],
        ),
        compiler_params=pltpu.CompilerParams(
            dimension_semantics=("arbitrary",),
        ),
    )(n_valid, logits_t, targets_p, alpha_p, gamma_p)
    return out[0, 0]


def _reference(logits, targets, alpha, gamma):
    log_prob = jax.nn.log_softmax(logits.astype(jnp.float32), axis=1)
    prob = jnp.exp(log_prob)
    onehot = jax.nn.one_hot(targets, logits.shape[1], dtype=jnp.float32)
    prob_gt = jnp.sum(prob * onehot, axis=1)
    gamma_t = gamma[targets]
    alpha_t = alpha[targets]
    focal_w = jnp.power(1.0 - prob_gt, gamma_t)
    loss = -alpha_t * focal_w * jnp.log(prob_gt + 1e-8)
    return jnp.mean(loss)


if __name__ == "__main__":
    num_classes = 7

    key = jax.random.PRNGKey(0)
    k1, k2, k3, k4 = jax.random.split(key, 4)

    # deterministic parameter init matching the module defaults
    alpha = jnp.ones((num_classes,), dtype=jnp.float32)
    gamma = jnp.ones((num_classes,), dtype=jnp.float32) * 2.0

    # Small case (module-default shapes).
    batch = 8
    logits = jax.random.normal(k1, (batch, num_classes), dtype=jnp.float32)
    targets = jax.random.randint(k2, (batch,), 0, num_classes, dtype=jnp.int32)
    loss = focal_loss_with_dynamic_gamma(logits, targets, alpha, gamma)
    jax.block_until_ready(loss)
    ref = _reference(logits, targets, alpha, gamma)
    assert jnp.allclose(loss, ref, rtol=1e-4, atol=1e-5), (loss, ref)

    # Multi-tile case with a ragged tail (exercises accumulation + masking).
    batch2 = 300
    logits2 = jax.random.normal(k3, (batch2, num_classes), dtype=jnp.float32)
    targets2 = jax.random.randint(k4, (batch2,), 0, num_classes, dtype=jnp.int32)
    loss2 = focal_loss_with_dynamic_gamma(logits2, targets2, alpha, gamma, tile_n=128)
    jax.block_until_ready(loss2)
    ref2 = _reference(logits2, targets2, alpha, gamma)
    assert jnp.allclose(loss2, ref2, rtol=1e-4, atol=1e-5), (loss2, ref2)

    print("KERNEL_OK")
</pallas_src>

<mosaic_0001>
module attributes {stable_mosaic.version = 11 : i64} {
  func.func @focal_loss_kernel(%arg0: i32, %arg1: memref<1xi32, #tpu.memory_space<smem>>, %arg2: memref<7x128xf32, #tpu.memory_space<vmem>>, %arg3: memref<1x128xi32, #tpu.memory_space<vmem>>, %arg4: memref<1x128xf32, #tpu.memory_space<vmem>>, %arg5: memref<1x128xf32, #tpu.memory_space<vmem>>, %arg6: memref<1x1xf32, #tpu.memory_space<vmem>>, %arg7: memref<1x1xf32, #tpu.memory_space<vmem>>) attributes {dimension_semantics = [#tpu.dimension_semantics<arbitrary>], iteration_bounds = array<i64: 1>, scalar_prefetch = 1 : i64, scratch_operands = 1 : i64, tpu.core_type = #tpu.core_type<tc>, window_params = [{transform_indices = @transform_0, window_bounds = array<i64: 7, 128>}, {transform_indices = @transform_1, window_bounds = array<i64: 1, 128>}, {transform_indices = @transform_2, window_bounds = array<i64: 1, 128>}, {transform_indices = @transform_3, window_bounds = array<i64: 1, 128>}, {pipeline_mode = #tpu.pipeline_mode<synchronous>, transform_indices = @transform_4, window_bounds = array<i64: 1, 1>}]} {
    %c0_i32 = arith.constant 0 : i32
    %0 = arith.cmpi eq, %arg0, %c0_i32 : i32
    %1 = arith.extui %0 : i1 to i32
    %c0_i32_0 = arith.constant 0 : i32
    %2 = arith.cmpi ne, %1, %c0_i32_0 : i32
    scf.if %2 {
      %cst_22 = arith.constant 0.000000e+00 : f32
      %57 = vector.broadcast %cst_22 : f32 to vector<1x1xf32>
      %c0_23 = arith.constant 0 : index
      %c0_24 = arith.constant 0 : index
      %58 = vector.load %arg7[%c0_23, %c0_24] : memref<1x1xf32, #tpu.memory_space<vmem>>, vector<1x1xf32>
      tpu.vector_store %arg7[%c0_23, %c0_24], %57 {strides = array<i32>} : memref<1x1xf32, #tpu.memory_space<vmem>>, vector<1x1xf32>,
    } else {
    }
    %c0 = arith.constant 0 : index
    %c0_1 = arith.constant 0 : index
    %3 = vector.load %arg2[%c0, %c0_1] : memref<7x128xf32, #tpu.memory_space<vmem>>, vector<7x128xf32>
    %c0_2 = arith.constant 0 : index
    %c0_3 = arith.constant 0 : index
    %4 = vector.load %arg3[%c0_2, %c0_3] : memref<1x128xi32, #tpu.memory_space<vmem>>, vector<1x128xi32>
    %c0_4 = arith.constant 0 : index
    %c0_5 = arith.constant 0 : index
    %5 = vector.load %arg4[%c0_4, %c0_5] : memref<1x128xf32, #tpu.memory_space<vmem>>, vector<1x128xf32>
    %c0_6 = arith.constant 0 : index
    %c0_7 = arith.constant 0 : index
    %6 = vector.load %arg5[%c0_6, %c0_7] : memref<1x128xf32, #tpu.memory_space<vmem>>, vector<1x128xf32>
    %cst = arith.constant dense<0xFF800000> : vector<128xf32>
    %7 = vector.multi_reduction <maximumf>, %3, %cst [0] : vector<7x128xf32> to vector<128xf32>
    %8 = vector.shape_cast %7 : vector<128xf32> to vector<1x128xf32>
    %9 = vector.broadcast %8 : vector<1x128xf32> to vector<7x128xf32>
    %10 = arith.subf %3, %9 : vector<7x128xf32>
    %11 = math.exp %10 : vector<7x128xf32>
    %cst_8 = arith.constant dense<0.000000e+00> : vector<128xf32>
    %12 = vector.multi_reduction <add>, %11, %cst_8 [0] : vector<7x128xf32> to vector<128xf32>
    %13 = vector.shape_cast %12 : vector<128xf32> to vector<1x128xf32>
    %14 = math.log %13 : vector<1x128xf32>
    %15 = tpu.iota {dimensions = array<i32: 0>} : vector<7x128xi32>
    %16 = vector.broadcast %4 : vector<1x128xi32> to vector<7x128xi32>
    %17 = arith.cmpi eq, %15, %16 : vector<7x128xi32>
    %18 = arith.extui %17 : vector<7x128xi1> to vector<7x128xi32>
    %19 = arith.sitofp %18 : vector<7x128xi32> to vector<7x128xf32>
    %20 = arith.mulf %10, %19 : vector<7x128xf32>
    %cst_9 = arith.constant dense<0.000000e+00> : vector<128xf32>
    %21 = vector.multi_reduction <add>, %20, %cst_9 [0] : vector<7x128xf32> to vector<128xf32>
    %22 = vector.shape_cast %21 : vector<128xf32> to vector<1x128xf32>
    %23 = arith.subf %22, %14 : vector<1x128xf32>
    %24 = math.exp %23 : vector<1x128xf32>
    %cst_10 = arith.constant 1.000000e+00 : f32
    %25 = vector.broadcast %cst_10 : f32 to vector<1x128xf32>
    %26 = arith.subf %25, %24 : vector<1x128xf32>
    %cst_11 = arith.constant 9.99999996E-13 : f32
    %27 = vector.broadcast %cst_11 : f32 to vector<1x128xf32>
    %28 = arith.maximumf %26, %27 : vector<1x128xf32>
    %29 = math.log %28 : vector<1x128xf32>
    %30 = arith.mulf %6, %29 : vector<1x128xf32>
    %31 = math.exp %30 : vector<1x128xf32>
    %cst_12 = arith.constant 0.000000e+00 : f32
    %32 = vector.broadcast %cst_12 : f32 to vector<1x128xf32>
    %33 = arith.subf %32, %5 : vector<1x128xf32>
    %34 = arith.mulf %33, %31 : vector<1x128xf32>
    %cst_13 = arith.constant 9.99999993E-9 : f32
    %35 = vector.broadcast %cst_13 : f32 to vector<1x128xf32>
    %36 = arith.addf %24, %35 : vector<1x128xf32>
    %37 = math.log %36 : vector<1x128xf32>
    %38 = arith.mulf %34, %37 : vector<1x128xf32>
    %39 = tpu.iota {dimensions = array<i32: 1>} : vector<1x128xi32>
    %c128_i32 = arith.constant 128 : i32
    %40 = arith.muli %arg0, %c128_i32 : i32
    %41 = vector.broadcast %40 : i32 to vector<1x128xi32>
    %42 = arith.addi %41, %39 : vector<1x128xi32>
    %c0_14 = arith.constant 0 : index
    %43 = memref.load %arg1[%c0_14] : memref<1xi32, #tpu.memory_space<smem>>
    %44 = vector.broadcast %43 : i32 to vector<1x128xi32>
    %45 = arith.cmpi slt, %42, %44 : vector<1x128xi32>
    %46 = arith.extui %45 : vector<1x128xi1> to vector<1x128xi32>
    %47 = arith.sitofp %46 : vector<1x128xi32> to vector<1x128xf32>
    %c0_15 = arith.constant 0 : index
    %c0_16 = arith.constant 0 : index
    %48 = vector.load %arg7[%c0_15, %c0_16] : memref<1x1xf32, #tpu.memory_space<vmem>>, vector<1x1xf32>
    %49 = arith.mulf %38, %47 : vector<1x128xf32>
    %cst_17 = arith.constant dense<0.000000e+00> : vector<1xf32>
    %50 = vector.multi_reduction <add>, %49, %cst_17 [1] : vector<1x128xf32> to vector<1xf32>
    %51 = vector.shape_cast %50 : vector<1xf32> to vector<1x1xf32>
    %52 = arith.addf %48, %51 : vector<1x1xf32>
    %c0_18 = arith.constant 0 : index
    %c0_19 = arith.constant 0 : index
    %53 = vector.load %arg7[%c0_18, %c0_19] : memref<1x1xf32, #tpu.memory_space<vmem>>, vector<1x1xf32>
    tpu.vector_store %arg7[%c0_18, %c0_19], %52 {strides = array<i32>} : memref<1x1xf32, #tpu.memory_space<vmem>>, vector<1x1xf32>,
    %c0_i32_20 = arith.constant 0 : i32
    %54 = arith.cmpi eq, %arg0, %c0_i32_20 : i32
    %55 = arith.extui %54 : i1 to i32
    %c0_i32_21 = arith.constant 0 : i32
    %56 = arith.cmpi ne, %55, %c0_i32_21 : i32
    scf.if %56 {
      %c0_22 = arith.constant 0 : index
      %c0_23 = arith.constant 0 : index
      %57 = vector.load %arg7[%c0_22, %c0_23] : memref<1x1xf32, #tpu.memory_space<vmem>>, vector<1x1xf32>
      %c0_24 = arith.constant 0 : index
      %58 = memref.load %arg1[%c0_24] : memref<1xi32, #tpu.memory_space<smem>>
      %59 = arith.sitofp %58 : i32 to f32
      %60 = vector.broadcast %59 : f32 to vector<1x1xf32>
      %61 = arith.divf %57, %60 : vector<1x1xf32>
      %c0_25 = arith.constant 0 : index
      %c0_26 = arith.constant 0 : index
      %62 = vector.load %arg6[%c0_25, %c0_26] : memref<1x1xf32, #tpu.memory_space<vmem>>, vector<1x1xf32>
      tpu.vector_store %arg6[%c0_25, %c0_26], %61 {strides = array<i32>} : memref<1x1xf32, #tpu.memory_space<vmem>>, vector<1x1xf32>,
    } else {
    }
    return
  }
  func.func @transform_0(%arg0: i32, %arg1: memref<1xi32, #tpu.memory_space<smem>>) -> (i32, i32) {
    %c0_i32 = arith.constant 0 : i32
    %c0_i32_0 = arith.constant 0 : i32
    return %c0_i32, %arg0 : i32, i32
  }
  func.func @transform_1(%arg0: i32, %arg1: memref<1xi32, #tpu.memory_space<smem>>) -> (i32, i32) {
    %c0_i32 = arith.constant 0 : i32
    %c0_i32_0 = arith.constant 0 : i32
    return %c0_i32, %arg0 : i32, i32
  }
  func.func @transform_2(%arg0: i32, %arg1: memref<1xi32, #tpu.memory_space<smem>>) -> (i32, i32) {
    %c0_i32 = arith.constant 0 : i32
    %c0_i32_0 = arith.constant 0 : i32
    return %c0_i32, %arg0 : i32, i32
  }
  func.func @transform_3(%arg0: i32, %arg1: memref<1xi32, #tpu.memory_space<smem>>) -> (i32, i32) {
    %c0_i32 = arith.constant 0 : i32
    %c0_i32_0 = arith.constant 0 : i32
    return %c0_i32, %arg0 : i32, i32
  }
  func.func @transform_4(%arg0: i32, %arg1: memref<1xi32, #tpu.memory_space<smem>>) -> (i32, i32) {
    %c0_i32 = arith.constant 0 : i32
    %c0_i32_0 = arith.constant 0 : i32
    %c0_i32_1 = arith.constant 0 : i32
    return %c0_i32, %c0_i32_0 : i32, i32
  }
}

</mosaic_0001>

<llo_original>
// kernel: tpu_custom_call.1
$region0: #{tpu_custom_call.1}
  #allocation0 [shape = 'u32[]', space=smem, size = 0x4, offset = 0x4, fixed_abs, tag = 'smem constant byte address 0x4 - core index']
  #allocation1 [shape = 'u32[144,128]{1,0:T(1,128)}', space=vmem, size = 0x12000, scoped, tag = 'internal scratch']
  #allocation2 [shape = 'f32[1,1]{1,0:T(1,128)}', space=vmem, size = 0x200, scoped, tag = 'scratch operand']
  #allocation3 [shape = 's32[1]{0}', space=sflag, size = 0x4, scoped, tag = 'scoped memory for tpu_custom_call.1']
  #allocation4 [shape = 's32[1]{0:T(128)S(6)}', space=smem, size = 0x200, scoped, tag = 'prefetched SMEM operand 0']
  %s0 = inlined_call_operand.<no memory space> [shape: s32[1], index: 0, kind: input, shape index: {}]
  %s1 = inlined_call_operand.hbm [shape: f32[7,128], index: 1, kind: input, shape index: {}]
  %s2 = inlined_call_operand.vmem [shape: s32[1,128], index: 2, kind: input, shape index: {}]
  %s3 = inlined_call_operand.vmem [shape: f32[1,128], index: 3, kind: input, shape index: {}]
  %s4 = inlined_call_operand.vmem [shape: f32[1,128], index: 4, kind: input, shape index: {}]
  %s5 = inlined_call_operand.hbm [shape: f32[1,1], index: 5, kind: output, shape index: {}]
  %s6 = sld [smem:[#allocation0]]
  $region38: #{tpu_custom_call.1} parent=0
    _
  %s8 = ssub.s32 1, %s6
  %s9 = scalar_select 0, %s8, %s6
  %10 = sst [smem:[#allocation4]] %s0
  $region1: #{tpu_custom_call.1} parent=0
    #allocation5 [shape = 'u8[4096]{0}', space=vmem, size = 0x1000, scoped, tag = 'input window, operand 1, single buffered']
    #allocation6 [shape = 's32[1]{0}', space=sflag, size = 0x4, scoped, tag = 'scoped memory for tpu_custom_call.1']
    #allocation7 [shape = 's32[1]{0}', space=sflag, size = 0x4, scoped, tag = 'scoped memory for tpu_custom_call.1']
    #allocation8 [shape = 'u8[512]{0}', space=vmem, size = 0x400, scoped, tag = 'output window, operand 0, single buffered']
    %11 = vsyncpa [#allocation6], 0
    %12 = vsyncpa [#allocation7], 0
    // Predicated region
    $region2: #{tpu_custom_call.1} parent=1 // pred_check
      _
    $region3: #{tpu_custom_call.1} parent=1 // pred_check_branch
      %14 = sbr.rel (0) target = $region5
    $region4: #{tpu_custom_call.1} parent=1 // pred_region
      %s16 = ssub.s32 128, 128
      %17 = vsyncadd [#allocation6], %s16
      %s19 = sshll.u32 [#allocation5], 4
      %s20 = int_to_ptr.vmem [resolvable:$true] %s19
      %22 = dma.hbm_to_vmem [thread:$0]  %s1, 128, %s20, [#allocation6]
    $region5: #{tpu_custom_call.1} parent=1 // pred_fallthru
      _
    // Predicated region
    $region6: #{tpu_custom_call.1} parent=1 // pred_check
      _
    $region7: #{tpu_custom_call.1} parent=1 // pred_check_branch
      %24 = sbr.rel (0) target = $region9
    $region8: #{tpu_custom_call.1} parent=1 // pred_region
      _
    $region9: #{tpu_custom_call.1} parent=1 // pred_fallthru
      _
    // Predicated region
    $region10: #{tpu_custom_call.1} parent=1 // pred_check
      _
    $region11: #{tpu_custom_call.1} parent=1 // pred_check_branch
      %26 = sbr.rel (0) target = $region13
    $region12: #{tpu_custom_call.1} parent=1 // pred_region
      _
    $region13: #{tpu_custom_call.1} parent=1 // pred_fallthru
      _
    // Predicated region
    $region14: #{tpu_custom_call.1} parent=1 // pred_check
      _
    $region15: #{tpu_custom_call.1} parent=1 // pred_check_branch
      %28 = sbr.rel (0) target = $region17
    $region16: #{tpu_custom_call.1} parent=1 // pred_region
      _
    $region17: #{tpu_custom_call.1} parent=1 // pred_fallthru
      _
    // Predicated region
    $region18: #{tpu_custom_call.1} parent=1 // pred_check
      _
    $region19: #{tpu_custom_call.1} parent=1 // pred_check_branch
      %30 = sbr.rel (0) target = $region21
    $region20: #{tpu_custom_call.1} parent=1 // pred_region
      %31 = dma.done [#allocation6], 128
    $region21: #{tpu_custom_call.1} parent=1 // pred_fallthru
      _
    %p32 = scmp.eq.s32.totalorder 0, 0
    // Predicated region
    $region22: #{tpu_custom_call.1} parent=1 // pred_check
      %p33 = pneg %p32
    $region23: #{tpu_custom_call.1} parent=1 // pred_check_branch
      %35 = sbr.rel (%p33) target = $region25
    $region24: #{tpu_custom_call.1} parent=1 // pred_region
      %vm36 = vcmask 0
      %37 = vst.msk [vmem:[#allocation2] sm:$0x1] %vm36, 0.0
    $region25: #{tpu_custom_call.1} parent=1 // pred_fallthru
      _
    %v38 = vld [vmem:[#allocation5] sm:$0x7f]
    %v39 = vld [vmem:[%s2] sm:$0x1]
    %v40 = vld [vmem:[%s3] sm:$0x1]
    %v41 = vld [vmem:[%s4] sm:$0x1]
    %vm42 = vcmask 1046528
    %v43 = vsel %vm42, %v38, -inf
    %v44 = vrot.slane %v43, 4
    %v45 = vmax.f32 %v43, %v44
    %v46 = vrot.slane %v45, 2
    %v47 = vmax.f32 %v45, %v46
    %v48 = vrot.slane %v47, 1
    %v49 = vmax.f32 %v47, %v48
    %v50 = vsub.f32 %v38, %v49
    %v51 = vmul.f32 %v50, 1.442695
    %v52 = vpow.pop %v51
    %v53 = vsel %vm42, %v52, 0.0
    %v54 = vrot.slane %v53, 4
    %v55 = vadd.f32 %v53, %v54
    %v56 = vrot.slane %v55, 2
    %v57 = vadd.f32 %v55, %v56
    %v58 = vrot.slane %v57, 1
    %v59 = vadd.f32 %v57, %v58
    %v60 = vlog2.pop %v59
    %v61 = vmul.f32 %v60, 0.6931472
    %v62 = vlaneseq
    %v63 = vshrl.u32 %v62, 7
    %v64 = vlaneseq
    %v65 = vshrl.u32 %v64, 7
    %v66 = vsub.s32 0, %v65
    %v67 = vrot.slane %v39, %v66
    %vm68 = vcmp.eq.s32.totalorder %v63, %v67
    %v69 = vsel %vm68, 1, 0
    %v70 = vcvt.s32.f32 %v69
    %v71 = vmul.f32 %v50, %v70
    %v72 = vsel %vm42, %v71, 0.0
    %v73 = vrot.slane %v72, 4
    %v74 = vadd.f32 %v72, %v73
    %v75 = vrot.slane %v74, 2
    %v76 = vadd.f32 %v74, %v75
    %v77 = vrot.slane %v76, 1
    %v78 = vadd.f32 %v76, %v77
    %v79 = vsub.f32 %v78, %v61
    %v80 = vmul.f32 %v79, 1.442695
    %v81 = vpow.pop %v80
    %v82 = vsub.f32 1.0, %v81
    %v83 = vmax.f32 %v82, 1e-12
    %v84 = vlog2.pop %v83
    %v85 = vmul.f32 %v84, 0.6931472
    %v86 = vmul.f32 %v41, %v85
    %v87 = vmul.f32 %v86, 1.442695
    %v88 = vpow.pop %v87
    %v89 = vsub.f32 0.0, %v40
    %v90 = vmul.f32 %v89, %v88
    %v91 = vadd.f32 %v81, 1e-08
    %v92 = vlog2.pop %v91
    %v93 = vmul.f32 %v92, 0.6931472
    %v94 = vmul.f32 %v90, %v93
    %v95 = vlaneseq
    %v96 = vand.u32 %v95, 127
    %s97 = smul.u32 0, 128
    %v98 = vstv %s97
    %v99 = vadd.s32 %v98, %v96
    %s100 = sld [smem:[#allocation4]]
    %v101 = vstv %s100
    %vm102 = vcmp.lt.s32.totalorder %v99, %v101
    %v103 = vsel %vm102, 1, 0
    %v104 = vcvt.s32.f32 %v103
    %v105 = vld [vmem:[#allocation2] sm:$0x1]
    %v106 = vmul.f32 %v94, %v104
    %vm107 = vcmask 1040384
    %v108 = vsel %vm107, %v106, 0.0
    %109 = vadd.xlane.f32.xlu0 %v108
    %v110 = vpop.xlane.xlu0 %109
    %v111 = vadd.f32 %v105, %v110
    %vm112 = vcmask 0
    %113 = vst.msk [vmem:[#allocation2] sm:$0x1] %vm112, %v111
    // Predicated region
    $region26: #{tpu_custom_call.1} parent=1 // pred_check
      %p114 = pneg %p32
    $region27: #{tpu_custom_call.1} parent=1 // pred_check_branch
      %116 = sbr.rel (%p114) target = $region29
    $region28: #{tpu_custom_call.1} parent=1 // pred_region
      %v117 = vld [vmem:[#allocation2] sm:$0x1]
      %s118 = sld [smem:[#allocation4]]
      %s119 = scvt.s32.f32 %s118
      %v120 = vstv %s119
      %v121 = vrcp.pop %v120
      %v122 = vmul.f32 %v117, %v121
      %123 = vst.msk [vmem:[#allocation8] sm:$0x1] %vm112, %v122
    $region29: #{tpu_custom_call.1} parent=1 // pred_fallthru
      _
    // Predicated region
    $region30: #{tpu_custom_call.1} parent=1 // pred_check
      _
    $region31: #{tpu_custom_call.1} parent=1 // pred_check_branch
      %125 = sbr.rel (0) target = $region33
    $region32: #{tpu_custom_call.1} parent=1 // pred_region
      %s127 = ssub.s32 16, 16
      %128 = vsyncadd [#allocation7], %s127
      %s130 = sshll.u32 [#allocation8], 4
      %s131 = int_to_ptr.vmem [resolvable:$true] %s130
      %133 = dma.vmem_to_hbm [thread:$0]  %s131, 16, %s5, [#allocation7]
    $region33: #{tpu_custom_call.1} parent=1 // pred_fallthru
      _
    // Predicated region
    $region34: #{tpu_custom_call.1} parent=1 // pred_check
      _
    $region35: #{tpu_custom_call.1} parent=1 // pred_check_branch
      %135 = sbr.rel (0) target = $region37
    $region36: #{tpu_custom_call.1} parent=1 // pred_region
      %136 = dma.done [#allocation7], 16
    $region37: #{tpu_custom_call.1} parent=1 // pred_fallthru
      _
    %137 = vsyncpa [#allocation6], 1
    %138 = vsyncpa [#allocation7], 1

</llo_original>
